<compile_context>
chip_gen: v7x
topology: tpu7x:2x2x1
jax: 0.10.0
libtpu: 0.0.40
codegen_flags: <defaults>
</compile_context>

<pallas_src>
import jax
import jax.numpy as jnp
from jax.experimental import pallas as pl
from jax.experimental.pallas import tpu as pltpu


def decoder_kernel(z_ref, w1_ref, b1_ref, w2_ref, b2_ref, out_ref):
    # linear1 on the MXU: bf16 inputs, f32 accumulation.
    h = jnp.dot(z_ref[...].astype(jnp.bfloat16), w1_ref[...],
                preferred_element_type=jnp.float32)
    # bias + ReLU in f32 (VPU); biases broadcast over the batch rows.
    h = jnp.maximum(h + b1_ref[...], 0.0)
    # linear2 on the MXU: bf16 inputs, f32 accumulation.
    o = jnp.dot(h.astype(jnp.bfloat16), w2_ref[...],
                preferred_element_type=jnp.float32)
    o = o + b2_ref[...]
    # sigmoid = 1 / (1 + exp(-o)); exp and the approximate reciprocal both go
    # to the EUP slot, keeping the VALU free.
    t = jnp.exp(-o)
    out_ref[...] = pl.reciprocal(1.0 + t, approx=True).astype(out_ref.dtype)


def decoder_forward(z, w1, b1, w2, b2, *, batch_tile=256):
    """z:[B,L] f32, w1:[L,H], b1:[1,H], w2:[H,O], b2:[1,O] (f32 params)."""
    B, L = z.shape
    H = w1.shape[1]
    O = w2.shape[1]

    # Weights are fed to the kernel in bf16 (MXU-native; halves weight VMEM/HBM
    # traffic). Biases stay f32 for the elementwise path.
    w1b = w1.astype(jnp.bfloat16)
    w2b = w2.astype(jnp.bfloat16)
    b1 = b1.astype(jnp.float32)
    b2 = b2.astype(jnp.float32)

    if B <= batch_tile:
        # Small batch: single invocation, whole arrays resident in VMEM.
        # No grid -> no pipeline prologue/epilogue or double-buffering overhead.
        return pl.pallas_call(
            decoder_kernel,
            out_shape=jax.ShapeDtypeStruct((B, O), jnp.float32),
            in_specs=[pl.BlockSpec(memory_space=pltpu.MemorySpace.VMEM)] * 5,
            out_specs=pl.BlockSpec(memory_space=pltpu.MemorySpace.VMEM),
        )(z, w1b, b1, w2b, b2)

    # Large batch: tile over batch. Weights/biases use a constant index_map so
    # they stay VMEM-resident; the batch axis is "parallel" so it can be
    # sharded across TensorCores (v7x) and overlapped with activation DMA.
    grid = (pl.cdiv(B, batch_tile),)
    return pl.pallas_call(
        decoder_kernel,
        out_shape=jax.ShapeDtypeStruct((B, O), jnp.float32),
        grid_spec=pl.GridSpec(
            grid=grid,
            in_specs=[
                pl.BlockSpec((batch_tile, L), lambda i: (i, 0)),
                pl.BlockSpec((L, H), lambda i: (0, 0)),
                pl.BlockSpec((1, H), lambda i: (0, 0)),
                pl.BlockSpec((H, O), lambda i: (0, 0)),
                pl.BlockSpec((1, O), lambda i: (0, 0)),
            ],
            out_specs=pl.BlockSpec((batch_tile, O), lambda i: (i, 0)),
        ),
        compiler_params=pltpu.CompilerParams(
            dimension_semantics=("parallel",),
        ),
    )(z, w1b, b1, w2b, b2)


def init_decoder_params(key, latent_size, hidden_size, out_size):
    # Deterministic init mimicking nn.Linear default (uniform +/- 1/sqrt(fan_in)).
    k1, k2, k3, k4 = jax.random.split(key, 4)
    bound1 = 1.0 / jnp.sqrt(latent_size)
    bound2 = 1.0 / jnp.sqrt(hidden_size)
    w1 = jax.random.uniform(k1, (latent_size, hidden_size), jnp.float32, -bound1, bound1)
    b1 = jax.random.uniform(k2, (1, hidden_size), jnp.float32, -bound1, bound1)
    w2 = jax.random.uniform(k3, (hidden_size, out_size), jnp.float32, -bound2, bound2)
    b2 = jax.random.uniform(k4, (1, out_size), jnp.float32, -bound2, bound2)
    return w1, b1, w2, b2


def decoder_ref_bf16(z, w1, b1, w2, b2):
    # Same bf16-in / f32-accumulate math as the kernel, in plain JAX.
    h = jnp.dot(z.astype(jnp.bfloat16), w1.astype(jnp.bfloat16),
                preferred_element_type=jnp.float32)
    h = jnp.maximum(h + b1, 0.0)
    o = jnp.dot(h.astype(jnp.bfloat16), w2.astype(jnp.bfloat16),
                preferred_element_type=jnp.float32)
    return jax.nn.sigmoid(o + b2)


def decoder_ref_f32(z, w1, b1, w2, b2):
    return jax.nn.sigmoid(jnp.maximum(z @ w1 + b1, 0.0) @ w2 + b2)


if __name__ == "__main__":
    latent_size, hidden_size, out_size = 32, 64, 128

    key = jax.random.PRNGKey(0)
    kz_s, kz_l, kp = jax.random.split(key, 3)
    w1, b1, w2, b2 = init_decoder_params(kp, latent_size, hidden_size, out_size)

    # Small batch: exercises the no-grid (single VMEM block) path.
    z_small = jax.random.normal(kz_s, (8, latent_size), jnp.float32)
    out_small = decoder_forward(z_small, w1, b1, w2, b2)
    jax.block_until_ready(out_small)

    # Larger batch: exercises the batch-tiled "parallel" grid path.
    z_large = jax.random.normal(kz_l, (512, latent_size), jnp.float32)
    out_large = decoder_forward(z_large, w1, b1, w2, b2, batch_tile=256)
    jax.block_until_ready(out_large)

    for z, out in ((z_small, out_small), (z_large, out_large)):
        ref_b = decoder_ref_bf16(z, w1, b1, w2, b2)
        ref_f = decoder_ref_f32(z, w1, b1, w2, b2)
        # Tight check against a reference using identical bf16/f32 math
        # (small slack for the EUP approximate reciprocal in the sigmoid).
        assert jnp.allclose(out, ref_b, atol=2e-3, rtol=2e-3)
        # Loose sanity check against the full-f32 PyTorch-equivalent forward.
        assert jnp.allclose(out, ref_f, atol=3e-2, rtol=3e-2)

    print("KERNEL_OK")
</pallas_src>

<mosaic_0001>
module attributes {stable_mosaic.version = 11 : i64} {
  func.func @decoder_kernel(%arg0: memref<8x32xf32, #tpu.memory_space<vmem>>, %arg1: memref<32x64xbf16, #tpu.memory_space<vmem>>, %arg2: memref<1x64xf32, #tpu.memory_space<vmem>>, %arg3: memref<64x128xbf16, #tpu.memory_space<vmem>>, %arg4: memref<1x128xf32, #tpu.memory_space<vmem>>, %arg5: memref<8x128xf32, #tpu.memory_space<vmem>>) attributes {dimension_semantics = [], scalar_prefetch = 0 : i64, scratch_operands = 0 : i64, tpu.core_type = #tpu.core_type<tc>} {
    %c0 = arith.constant 0 : index
    %c0_0 = arith.constant 0 : index
    %0 = vector.load %arg0[%c0, %c0_0] : memref<8x32xf32, #tpu.memory_space<vmem>>, vector<8x32xf32>
    %1 = arith.truncf %0 : vector<8x32xf32> to vector<8x32xbf16>
    %c0_1 = arith.constant 0 : index
    %c0_2 = arith.constant 0 : index
    %2 = vector.load %arg1[%c0_1, %c0_2] : memref<32x64xbf16, #tpu.memory_space<vmem>>, vector<32x64xbf16>
    %cst = arith.constant dense<0.000000e+00> : vector<8x64xf32>
    %3 = tpu.matmul %1, %2, %cst {dimension_numbers = #tpu.dot_dimension_numbers<[1], [0], [0], [1], [0, 0, 1, 1], [], []>} : vector<8x32xbf16>, vector<32x64xbf16>, vector<8x64xf32> -> vector<8x64xf32>
    %c0_3 = arith.constant 0 : index
    %c0_4 = arith.constant 0 : index
    %4 = vector.load %arg2[%c0_3, %c0_4] : memref<1x64xf32, #tpu.memory_space<vmem>>, vector<1x64xf32>
    %5 = vector.broadcast %4 : vector<1x64xf32> to vector<8x64xf32>
    %6 = arith.addf %3, %5 : vector<8x64xf32>
    %cst_5 = arith.constant 0.000000e+00 : f32
    %7 = vector.broadcast %cst_5 : f32 to vector<8x64xf32>
    %8 = arith.maximumf %6, %7 : vector<8x64xf32>
    %9 = arith.truncf %8 : vector<8x64xf32> to vector<8x64xbf16>
    %c0_6 = arith.constant 0 : index
    %c0_7 = arith.constant 0 : index
    %10 = vector.load %arg3[%c0_6, %c0_7] : memref<64x128xbf16, #tpu.memory_space<vmem>>, vector<64x128xbf16>
    %cst_8 = arith.constant dense<0.000000e+00> : vector<8x128xf32>
    %11 = tpu.matmul %9, %10, %cst_8 {dimension_numbers = #tpu.dot_dimension_numbers<[1], [0], [0], [1], [0, 0, 1, 1], [], []>} : vector<8x64xbf16>, vector<64x128xbf16>, vector<8x128xf32> -> vector<8x128xf32>
    %c0_9 = arith.constant 0 : index
    %c0_10 = arith.constant 0 : index
    %12 = vector.load %arg4[%c0_9, %c0_10] : memref<1x128xf32, #tpu.memory_space<vmem>>, vector<1x128xf32>
    %13 = vector.broadcast %12 : vector<1x128xf32> to vector<8x128xf32>
    %14 = arith.addf %11, %13 : vector<8x128xf32>
    %cst_11 = arith.constant 0.000000e+00 : f32
    %15 = vector.broadcast %cst_11 : f32 to vector<8x128xf32>
    %16 = arith.subf %15, %14 : vector<8x128xf32>
    %17 = math.exp %16 : vector<8x128xf32>
    %cst_12 = arith.constant 1.000000e+00 : f32
    %18 = vector.broadcast %cst_12 : f32 to vector<8x128xf32>
    %19 = arith.addf %18, %17 : vector<8x128xf32>
    %20 = tpu.reciprocal %19 {approx = true} : vector<8x128xf32> -> vector<8x128xf32>
    %c0_13 = arith.constant 0 : index
    %c0_14 = arith.constant 0 : index
    %21 = vector.load %arg5[%c0_13, %c0_14] : memref<8x128xf32, #tpu.memory_space<vmem>>, vector<8x128xf32>
    tpu.vector_store %arg5[%c0_13, %c0_14], %20 {strides = array<i32>} : memref<8x128xf32, #tpu.memory_space<vmem>>, vector<8x128xf32>,
    return
  }
}

</mosaic_0001>

<llo_original>
// kernel: tpu_custom_call.1
$region0: #{tpu_custom_call.1}
  #allocation0 [shape = 'u32[]', space=smem, size = 0x4, offset = 0x4, fixed_abs, tag = 'smem constant byte address 0x4 - core index']
  #allocation1 [shape = 'u32[144,128]{1,0:T(1,128)}', space=vmem, size = 0x12000, scoped, tag = 'internal scratch']
  %s0 = inlined_call_operand.hbm [shape: f32[8,32], index: 0, kind: input, shape index: {}]
  %s1 = inlined_call_operand.hbm [shape: bf16[32,64], index: 1, kind: input, shape index: {}]
  %s2 = inlined_call_operand.vmem [shape: f32[1,64], index: 2, kind: input, shape index: {}]
  %s3 = inlined_call_operand.hbm [shape: bf16[64,128], index: 3, kind: input, shape index: {}]
  %s4 = inlined_call_operand.vmem [shape: f32[1,128], index: 4, kind: input, shape index: {}]
  %s5 = inlined_call_operand.hbm [shape: f32[8,128], index: 5, kind: output, shape index: {}]
  %s6 = sld [smem:[#allocation0]]
  $region42: #{tpu_custom_call.1} parent=0
    _
  %s8 = ssub.s32 1, %s6
  %s9 = scalar_select 0, %s8, %s6
  $region1: #{tpu_custom_call.1} parent=0
    #allocation2 [shape = 'u8[4096]{0}', space=vmem, size = 0x1000, scoped, tag = 'input window, operand 0, single buffered']
    #allocation3 [shape = 's32[1]{0}', space=sflag, size = 0x4, scoped, tag = 'scoped memory for tpu_custom_call.1']
    #allocation4 [shape = 's32[1]{0}', space=sflag, size = 0x4, scoped, tag = 'scoped memory for tpu_custom_call.1']
    #allocation5 [shape = 'u8[8192]{0}', space=vmem, size = 0x2000, scoped, tag = 'input window, operand 1, single buffered']
    #allocation6 [shape = 's32[1]{0}', space=sflag, size = 0x4, scoped, tag = 'scoped memory for tpu_custom_call.1']
    #allocation7 [shape = 'u8[16384]{0}', space=vmem, size = 0x4000, scoped, tag = 'input window, operand 3, single buffered']
    #allocation8 [shape = 'u8[4096]{0}', space=vmem, size = 0x1000, scoped, tag = 'output window, operand 0, single buffered']
    %10 = vsyncpa [#allocation3], 0
    %11 = vsyncpa [#allocation6], 0
    %12 = vsyncpa [#allocation4], 0
    // Predicated region
    $region2: #{tpu_custom_call.1} parent=1 // pred_check
      _
    $region3: #{tpu_custom_call.1} parent=1 // pred_check_branch
      %14 = sbr.rel (0) target = $region5
    $region4: #{tpu_custom_call.1} parent=1 // pred_region
      %s16 = ssub.s32 128, 128
      %17 = vsyncadd [#allocation3], %s16
      %s19 = sshll.u32 [#allocation2], 4
      %s20 = int_to_ptr.vmem [resolvable:$true] %s19
      %22 = dma.hbm_to_vmem [thread:$0]  %s0, 128, %s20, [#allocation3]
    $region5: #{tpu_custom_call.1} parent=1 // pred_fallthru
      _
    // Predicated region
    $region6: #{tpu_custom_call.1} parent=1 // pred_check
      _
    $region7: #{tpu_custom_call.1} parent=1 // pred_check_branch
      %24 = sbr.rel (0) target = $region9
    $region8: #{tpu_custom_call.1} parent=1 // pred_region
      %s26 = ssub.s32 256, 256
      %27 = vsyncadd [#allocation6], %s26
      %s28 = sshll.u32 [#allocation5], 4
      %s29 = int_to_ptr.vmem [resolvable:$true] %s28
      %34 = dma.hbm_to_vmem [thread:$0]  %s1, 256, %s29, [#allocation6], 64, 64, 4
    $region9: #{tpu_custom_call.1} parent=1 // pred_fallthru
      _
    // Predicated region
    $region10: #{tpu_custom_call.1} parent=1 // pred_check
      _
    $region11: #{tpu_custom_call.1} parent=1 // pred_check_branch
      %36 = sbr.rel (0) target = $region13
    $region12: #{tpu_custom_call.1} parent=1 // pred_region
      _
    $region13: #{tpu_custom_call.1} parent=1 // pred_fallthru
      _
    // Predicated region
    $region14: #{tpu_custom_call.1} parent=1 // pred_check
      _
    $region15: #{tpu_custom_call.1} parent=1 // pred_check_branch
      %38 = sbr.rel (0) target = $region17
    $region16: #{tpu_custom_call.1} parent=1 // pred_region
      %s40 = ssub.s32 512, 512
      %41 = vsyncadd [#allocation6], %s40
      %s42 = sshll.u32 [#allocation7], 4
      %s43 = int_to_ptr.vmem [resolvable:$true] %s42
      %48 = dma.hbm_to_vmem [thread:$0]  %s3, 512, %s43, [#allocation6], 64, 64, 4
    $region17: #{tpu_custom_call.1} parent=1 // pred_fallthru
      _
    // Predicated region
    $region18: #{tpu_custom_call.1} parent=1 // pred_check
      _
    $region19: #{tpu_custom_call.1} parent=1 // pred_check_branch
      %50 = sbr.rel (0) target = $region21
    $region20: #{tpu_custom_call.1} parent=1 // pred_region
      _
    $region21: #{tpu_custom_call.1} parent=1 // pred_fallthru
      _
    // Predicated region
    $region22: #{tpu_custom_call.1} parent=1 // pred_check
      _
    $region23: #{tpu_custom_call.1} parent=1 // pred_check_branch
      %52 = sbr.rel (0) target = $region25
    $region24: #{tpu_custom_call.1} parent=1 // pred_region
      %53 = dma.done [#allocation3], 128
    $region25: #{tpu_custom_call.1} parent=1 // pred_fallthru
      _
    // Predicated region
    $region26: #{tpu_custom_call.1} parent=1 // pred_check
      _
    $region27: #{tpu_custom_call.1} parent=1 // pred_check_branch
      %55 = sbr.rel (0) target = $region29
    $region28: #{tpu_custom_call.1} parent=1 // pred_region
      %56 = dma.done [#allocation6], 256
    $region29: #{tpu_custom_call.1} parent=1 // pred_fallthru
      _
    // Predicated region
    $region30: #{tpu_custom_call.1} parent=1 // pred_check
      _
    $region31: #{tpu_custom_call.1} parent=1 // pred_check_branch
      %58 = sbr.rel (0) target = $region33
    $region32: #{tpu_custom_call.1} parent=1 // pred_region
      %59 = dma.done [#allocation6], 512
    $region33: #{tpu_custom_call.1} parent=1 // pred_fallthru
      _
    %v61 = vld [vmem:[#allocation2] sm:$0xff]
    %v62 = vpack.c.bf16 %v61, %v61
    %v63 = vld [vmem:[#allocation5] sm:$0xf]
    %v64 = vld [vmem:[#allocation5 + $0x4] sm:$0xf]
    %v65 = vld [vmem:[#allocation5 + $0x8] sm:$0xf]
    %v66 = vld [vmem:[#allocation5 + $0xc] sm:$0xf]
    %v67 = vld [vmem:[%s2] sm:$0x1]
    %v69 = vlaneseq
    %v70 = vshrl.u32 %v69, 7
    %v71 = vsub.s32 0, %v70
    %v72 = vrot.slane %v67, %v71
    %v78 = vunpack.c.l.b16 %v63
    %v79 = vunpack.c.l.b16 %v64
    %v80 = vunpack.c.l.b16 %v65
    %v81 = vunpack.c.l.b16 %v66
    %v82 = vpack.c.b16 %v79, %v78
    %v83 = vpack.c.b16 %v81, %v80
    %vm86 = vcmask 261120
    %v88 = vsel %vm86, %v62, 0
    %90 = vmatprep.subr.bf16.mxu0 0
    %91 = vmatpush1.bf16.msra.mxu0 %v82
    %92 = vmatprep.subr.bf16.mxu0 0
    %93 = vmatpush1.bf16.msra.mxu0 %v83
    %94 = vmatprep.subr.bf16.mxu0 0
    %95 = vmatpush1.bf16.msra.mxu0 0
    %96 = vmatprep.subr.bf16.mxu0 0
    %97 = vmatpush1.bf16.msra.mxu0 0
    %98 = vmatprep.subr.bf16.mxu0 0
    %99 = vmatpush1.bf16.msra.mxu0 0
    %100 = vmatprep.subr.bf16.mxu0 0
    %101 = vmatpush1.bf16.msra.mxu0 0
    %102 = vmatprep.subr.bf16.mxu0 0
    %103 = vmatpush1.bf16.msra.mxu0 0
    %104 = vmatprep.subr.bf16.mxu0 0
    %105 = vmatpush1.bf16.msra.mxu0 0
    %106 = vmatprep.subr.bf16.mxu0 0
    %107 = vmatpush1.bf16.msra.mxu0 0
    %108 = vmatprep.subr.bf16.mxu0 0
    %109 = vmatpush1.bf16.msra.mxu0 0
    %110 = vmatprep.subr.bf16.mxu0 0
    %111 = vmatpush1.bf16.msra.mxu0 0
    %112 = vmatprep.subr.bf16.mxu0 0
    %113 = vmatpush1.bf16.msra.mxu0 0
    %114 = vmatprep.subr.bf16.mxu0 0
    %115 = vmatpush1.bf16.msra.mxu0 0
    %116 = vmatprep.subr.bf16.mxu0 0
    %117 = vmatpush1.bf16.msra.mxu0 0
    %118 = vmatprep.subr.bf16.mxu0 0
    %119 = vmatpush1.bf16.msra.mxu0 0
    %120 = vmatprep.subr.bf16.mxu0 0
    %121 = vmatpush1.bf16.msra.mxu0 0
    %122 = vmatprep.mubr.bf16.mxu0 0
    %123 = vmatmul.mubr.bf16.gmra.mrb[0].mxu0 %v88
    %v124 = vpop.f32.mrb[0].mxu0
    %v125 = vadd.f32 %v72, %v124
    %v126 = vpop.f32.mrb[0].mxu0
    %v127 = vpop.f32.mrb[0].mxu0
    %v128 = vpop.f32.mrb[0].mxu0
    %129 = vdwg.mxu0
    %v130 = vmax.f32 %v125, 0.0
    %v131 = vpack.c.bf16 %v130, %v130
    %v132 = vld [vmem:[#allocation7] sm:$0xf]
    %v133 = vld [vmem:[#allocation7 + $0x4] sm:$0xf]
    %v134 = vld [vmem:[#allocation7 + $0x8] sm:$0xf]
    %v135 = vld [vmem:[#allocation7 + $0xc] sm:$0xf]
    %v136 = vld [vmem:[#allocation7 + $0x10] sm:$0xf]
    %v137 = vld [vmem:[#allocation7 + $0x14] sm:$0xf]
    %v138 = vld [vmem:[#allocation7 + $0x18] sm:$0xf]
    %v139 = vld [vmem:[#allocation7 + $0x1c] sm:$0xf]
    %v140 = vld [vmem:[%s4] sm:$0x1]
    %v142 = vlaneseq
    %v143 = vshrl.u32 %v142, 7
    %v144 = vsub.s32 0, %v143
    %v145 = vrot.slane %v140, %v144
    %v155 = vunpack.c.l.b16 %v132
    %v156 = vunpack.c.l.b16 %v133
    %v157 = vunpack.c.l.b16 %v134
    %v158 = vunpack.c.l.b16 %v135
    %v159 = vunpack.c.l.b16 %v136
    %v160 = vunpack.c.l.b16 %v137
    %v161 = vunpack.c.l.b16 %v138
    %v162 = vunpack.c.l.b16 %v139
    %v163 = vpack.c.b16 %v156, %v155
    %v164 = vpack.c.b16 %v158, %v157
    %v165 = vpack.c.b16 %v160, %v159
    %v166 = vpack.c.b16 %v162, %v161
    %vm171 = vcmask 523264
    %v173 = vsel %vm171, %v131, 0
    %175 = vmatprep.subr.bf16.mxu0 0
    %176 = vmatpush1.bf16.msra.mxu0 %v163
    %177 = vmatprep.subr.bf16.mxu0 0
    %178 = vmatpush1.bf16.msra.mxu0 %v164
    %179 = vmatprep.subr.bf16.mxu0 0
    %180 = vmatpush1.bf16.msra.mxu0 %v165
    %181 = vmatprep.subr.bf16.mxu0 0
    %182 = vmatpush1.bf16.msra.mxu0 %v166
    %183 = vmatprep.subr.bf16.mxu0 0
    %184 = vmatpush1.bf16.msra.mxu0 0
    %185 = vmatprep.subr.bf16.mxu0 0
    %186 = vmatpush1.bf16.msra.mxu0 0
    %187 = vmatprep.subr.bf16.mxu0 0
    %188 = vmatpush1.bf16.msra.mxu0 0
    %189 = vmatprep.subr.bf16.mxu0 0
    %190 = vmatpush1.bf16.msra.mxu0 0
    %191 = vmatprep.subr.bf16.mxu0 0
    %192 = vmatpush1.bf16.msra.mxu0 0
    %193 = vmatprep.subr.bf16.mxu0 0
    %194 = vmatpush1.bf16.msra.mxu0 0
    %195 = vmatprep.subr.bf16.mxu0 0
    %196 = vmatpush1.bf16.msra.mxu0 0
    %197 = vmatprep.subr.bf16.mxu0 0
    %198 = vmatpush1.bf16.msra.mxu0 0
    %199 = vmatprep.subr.bf16.mxu0 0
    %200 = vmatpush1.bf16.msra.mxu0 0
    %201 = vmatprep.subr.bf16.mxu0 0
    %202 = vmatpush1.bf16.msra.mxu0 0
    %203 = vmatprep.subr.bf16.mxu0 0
    %204 = vmatpush1.bf16.msra.mxu0 0
    %205 = vmatprep.subr.bf16.mxu0 0
    %206 = vmatpush1.bf16.msra.mxu0 0
    %207 = vmatprep.mubr.bf16.mxu0 0
    %208 = vmatmul.mubr.bf16.gmra.mrb[0].mxu0 %v173
    %v209 = vpop.f32.mrb[0].mxu0
    %v210 = vadd.f32 %v145, %v209
    %v211 = vpop.f32.mrb[0].mxu0
    %v212 = vpop.f32.mrb[0].mxu0
    %v213 = vpop.f32.mrb[0].mxu0
    %214 = vdwg.mxu0
    %v215 = vsub.f32 0.0, %v210
    %v216 = vmul.f32 %v215, 1.442695
    %v217 = vpow.pop %v216
    %v218 = vadd.f32 %v217, 1.0
    %v219 = vrcp.pop %v218
    %220 = vst [vmem:[#allocation8] sm:$0xff] %v219
    // Predicated region
    $region34: #{tpu_custom_call.1} parent=1 // pred_check
      _
    $region35: #{tpu_custom_call.1} parent=1 // pred_check_branch
      %222 = sbr.rel (0) target = $region37
    $region36: #{tpu_custom_call.1} parent=1 // pred_region
      %s224 = ssub.s32 128, 128
      %225 = vsyncadd [#allocation4], %s224
      %s227 = sshll.u32 [#allocation8], 4
      %s228 = int_to_ptr.vmem [resolvable:$true] %s227
      %230 = dma.vmem_to_hbm [thread:$0]  %s228, 128, %s5, [#allocation4]
    $region37: #{tpu_custom_call.1} parent=1 // pred_fallthru
      _
    // Predicated region
    $region38: #{tpu_custom_call.1} parent=1 // pred_check
      _
    $region39: #{tpu_custom_call.1} parent=1 // pred_check_branch
      %232 = sbr.rel (0) target = $region41
    $region40: #{tpu_custom_call.1} parent=1 // pred_region
      %233 = dma.done [#allocation4], 128
    $region41: #{tpu_custom_call.1} parent=1 // pred_fallthru
      _
    %234 = vsyncpa [#allocation3], 1
    %235 = vsyncpa [#allocation6], 1
    %236 = vsyncpa [#allocation4], 1

</llo_original>
